<compile_context>
chip_gen: v6e
topology: v6e:2x2x1
jax: 0.10.0
libtpu: 0.0.40
codegen_flags: <defaults>
</compile_context>

<pallas_src>
import jax
import jax.numpy as jnp
from jax.experimental import pallas as pl
from jax.experimental.pallas import tpu as pltpu

INPUT_SIZE = 10
HIDDEN_SIZE = 20
OUTPUT_SIZE = 5
BATCH = 1

HP = 32           # per-gate padded lane width (zero-padded 20 -> 32)
GATE_W = 4 * HP   # fused gate output width = 128 lanes (one full vreg row)


def lstm_kernel(x_ref, h_ref, c_ref,
                wgx_ref, wgh_ref, bg_ref,
                wy_ref, by_ref,
                y_ref, h_out_ref, c_out_ref):
    x = x_ref[...]            # (B, INPUT_SIZE)
    h = h_ref[...]            # (B, HIDDEN_SIZE)
    c_prev = c_ref[...]       # (B, HIDDEN_SIZE)

    # One fused matmul for all four gates: (B, 128) result, unmasked lanes.
    gates = (jnp.dot(x, wgx_ref[...], preferred_element_type=jnp.float32)
             + jnp.dot(h, wgh_ref[...], preferred_element_type=jnp.float32)
             + bg_ref[...])

    # Static lane slices; each gate starts at a 32-lane offset.
    i_t = jax.nn.sigmoid(gates[:, 0 * HP:0 * HP + HIDDEN_SIZE])
    f_t = jax.nn.sigmoid(gates[:, 1 * HP:1 * HP + HIDDEN_SIZE])
    o_t = jax.nn.sigmoid(gates[:, 2 * HP:2 * HP + HIDDEN_SIZE])
    c_tilde = jnp.tanh(gates[:, 3 * HP:3 * HP + HIDDEN_SIZE])

    c_new = f_t * c_prev + i_t * c_tilde
    h_new = o_t * jnp.tanh(c_new)

    y = jnp.dot(h_new, wy_ref[...], preferred_element_type=jnp.float32) + by_ref[...]

    y_ref[...] = y.astype(y_ref.dtype)
    h_out_ref[...] = h_new.astype(h_out_ref.dtype)
    c_out_ref[...] = c_new.astype(c_out_ref.dtype)


def pack_params(params):
    """Fuse per-gate Linear weights into lane-padded slabs (done once, offline)."""
    def pad_cols(a):  # (rows, HIDDEN) -> (rows, HP), zero-padded columns
        return jnp.pad(a, ((0, 0), (0, HP - HIDDEN_SIZE)))

    # gate order: i, f, o, c
    wg = jnp.concatenate(
        [pad_cols(params[k]) for k in ("wi", "wf", "wo", "wc")], axis=1)   # (30, 128)
    bg = jnp.concatenate(
        [pad_cols(params[k]) for k in ("bi", "bf", "bo", "bc")], axis=1)   # (1, 128)
    return {
        "wgx": wg[:INPUT_SIZE],          # (10, 128)  x-part of fused gate weights
        "wgh": wg[INPUT_SIZE:],          # (20, 128)  h-part of fused gate weights
        "bg": bg,                        # (1, 128)
        "wy": params["wy"],              # (20, 5)
        "by": params["by"],              # (1, 5)
    }


def lstm_forward(x, hidden, packed):
    """x: (B, input_size); hidden: (h, c) each (B, hidden_size). Single step."""
    h, c = hidden
    vmem = pl.BlockSpec(memory_space=pltpu.MemorySpace.VMEM)
    inputs = (x, h, c,
              packed["wgx"], packed["wgh"], packed["bg"],
              packed["wy"], packed["by"])
    out_shapes = (
        jax.ShapeDtypeStruct((BATCH, OUTPUT_SIZE), jnp.float32),
        jax.ShapeDtypeStruct((BATCH, HIDDEN_SIZE), jnp.float32),
        jax.ShapeDtypeStruct((BATCH, HIDDEN_SIZE), jnp.float32),
    )
    y, h_new, c_new = pl.pallas_call(
        lstm_kernel,
        out_shape=out_shapes,
        in_specs=[vmem] * len(inputs),
        out_specs=(vmem, vmem, vmem),
    )(*inputs)
    return y, (h_new, c_new)
    # TODO(synk): for sequence processing, move a T-step lax.fori_loop inside
    # the kernel with (h, c) in VMEM scratch and hoist the h2y projection out
    # of the loop; the module spec here is a single recurrence step.


def init_params(key):
    """Deterministic parameter init (torch.nn.Linear-style uniform bounds)."""
    d_in = INPUT_SIZE + HIDDEN_SIZE
    params = {}
    names = [("wi", "bi", d_in, HIDDEN_SIZE),
             ("wf", "bf", d_in, HIDDEN_SIZE),
             ("wo", "bo", d_in, HIDDEN_SIZE),
             ("wc", "bc", d_in, HIDDEN_SIZE),
             ("wy", "by", HIDDEN_SIZE, OUTPUT_SIZE)]
    for wname, bname, fan_in, fan_out in names:
        key, kw, kb = jax.random.split(key, 3)
        bound = 1.0 / jnp.sqrt(fan_in)
        # stored already transposed: (in_features, out_features)
        params[wname] = jax.random.uniform(kw, (fan_in, fan_out),
                                           jnp.float32, -bound, bound)
        params[bname] = jax.random.uniform(kb, (1, fan_out),
                                           jnp.float32, -bound, bound)
    return params


def lstm_reference(x, hidden, params):
    h, c = hidden
    comb = jnp.concatenate([x, h], axis=1)
    i_t = jax.nn.sigmoid(comb @ params["wi"] + params["bi"])
    f_t = jax.nn.sigmoid(comb @ params["wf"] + params["bf"])
    o_t = jax.nn.sigmoid(comb @ params["wo"] + params["bo"])
    c_tilde = jnp.tanh(comb @ params["wc"] + params["bc"])
    c_new = f_t * c + i_t * c_tilde
    h_new = o_t * jnp.tanh(c_new)
    y = h_new @ params["wy"] + params["by"]
    return y, (h_new, c_new)


if __name__ == "__main__":
    key = jax.random.PRNGKey(0)
    key, kx = jax.random.split(key)
    params = init_params(key)
    packed = pack_params(params)

    x = jax.random.normal(kx, (BATCH, INPUT_SIZE), jnp.float32)
    hidden0 = (jnp.zeros((BATCH, HIDDEN_SIZE), jnp.float32),
               jnp.zeros((BATCH, HIDDEN_SIZE), jnp.float32))

    y, (h, c) = lstm_forward(x, hidden0, packed)
    jax.block_until_ready((y, h, c))

    y_ref, (h_ref, c_ref) = lstm_reference(x, hidden0, params)
    assert jnp.allclose(y, y_ref, atol=1e-5), "y mismatch"
    assert jnp.allclose(h, h_ref, atol=1e-5), "h mismatch"
    assert jnp.allclose(c, c_ref, atol=1e-5), "c mismatch"

    print("KERNEL_OK")
</pallas_src>

<mosaic_0001>
module attributes {stable_mosaic.version = 11 : i64} {
  func.func @lstm_kernel(%arg0: memref<1x10xf32, #tpu.memory_space<vmem>>, %arg1: memref<1x20xf32, #tpu.memory_space<vmem>>, %arg2: memref<1x20xf32, #tpu.memory_space<vmem>>, %arg3: memref<10x128xf32, #tpu.memory_space<vmem>>, %arg4: memref<20x128xf32, #tpu.memory_space<vmem>>, %arg5: memref<1x128xf32, #tpu.memory_space<vmem>>, %arg6: memref<20x5xf32, #tpu.memory_space<vmem>>, %arg7: memref<1x5xf32, #tpu.memory_space<vmem>>, %arg8: memref<1x5xf32, #tpu.memory_space<vmem>>, %arg9: memref<1x20xf32, #tpu.memory_space<vmem>>, %arg10: memref<1x20xf32, #tpu.memory_space<vmem>>) attributes {dimension_semantics = [], scalar_prefetch = 0 : i64, scratch_operands = 0 : i64, tpu.core_type = #tpu.core_type<tc>} {
    %c0 = arith.constant 0 : index
    %c0_0 = arith.constant 0 : index
    %0 = vector.load %arg0[%c0, %c0_0] : memref<1x10xf32, #tpu.memory_space<vmem>>, vector<1x10xf32>
    %c0_1 = arith.constant 0 : index
    %c0_2 = arith.constant 0 : index
    %1 = vector.load %arg1[%c0_1, %c0_2] : memref<1x20xf32, #tpu.memory_space<vmem>>, vector<1x20xf32>
    %c0_3 = arith.constant 0 : index
    %c0_4 = arith.constant 0 : index
    %2 = vector.load %arg2[%c0_3, %c0_4] : memref<1x20xf32, #tpu.memory_space<vmem>>, vector<1x20xf32>
    %c0_5 = arith.constant 0 : index
    %c0_6 = arith.constant 0 : index
    %3 = vector.load %arg3[%c0_5, %c0_6] : memref<10x128xf32, #tpu.memory_space<vmem>>, vector<10x128xf32>
    %cst = arith.constant dense<0.000000e+00> : vector<1x128xf32>
    %4 = tpu.matmul %0, %3, %cst {dimension_numbers = #tpu.dot_dimension_numbers<[1], [0], [0], [1], [0, 0, 1, 1], [], []>} : vector<1x10xf32>, vector<10x128xf32>, vector<1x128xf32> -> vector<1x128xf32>
    %c0_7 = arith.constant 0 : index
    %c0_8 = arith.constant 0 : index
    %5 = vector.load %arg4[%c0_7, %c0_8] : memref<20x128xf32, #tpu.memory_space<vmem>>, vector<20x128xf32>
    %cst_9 = arith.constant dense<0.000000e+00> : vector<1x128xf32>
    %6 = tpu.matmul %1, %5, %cst_9 {dimension_numbers = #tpu.dot_dimension_numbers<[1], [0], [0], [1], [0, 0, 1, 1], [], []>} : vector<1x20xf32>, vector<20x128xf32>, vector<1x128xf32> -> vector<1x128xf32>
    %7 = arith.addf %4, %6 : vector<1x128xf32>
    %c0_10 = arith.constant 0 : index
    %c0_11 = arith.constant 0 : index
    %8 = vector.load %arg5[%c0_10, %c0_11] : memref<1x128xf32, #tpu.memory_space<vmem>>, vector<1x128xf32>
    %9 = arith.addf %7, %8 : vector<1x128xf32>
    %10 = vector.extract_strided_slice %9 {offsets = [0, 0], sizes = [1, 20], strides = [1, 1]} : vector<1x128xf32> to vector<1x20xf32>
    %11 = arith.negf %10 : vector<1x20xf32>
    %12 = math.exp %11 : vector<1x20xf32>
    %cst_12 = arith.constant 1.000000e+00 : f32
    %13 = vector.broadcast %cst_12 : f32 to vector<1x20xf32>
    %14 = arith.addf %13, %12 : vector<1x20xf32>
    %15 = arith.divf %13, %14 : vector<1x20xf32>
    %16 = vector.extract_strided_slice %9 {offsets = [0, 32], sizes = [1, 20], strides = [1, 1]} : vector<1x128xf32> to vector<1x20xf32>
    %17 = arith.negf %16 : vector<1x20xf32>
    %18 = math.exp %17 : vector<1x20xf32>
    %cst_13 = arith.constant 1.000000e+00 : f32
    %19 = vector.broadcast %cst_13 : f32 to vector<1x20xf32>
    %20 = arith.addf %19, %18 : vector<1x20xf32>
    %21 = arith.divf %19, %20 : vector<1x20xf32>
    %22 = vector.extract_strided_slice %9 {offsets = [0, 64], sizes = [1, 20], strides = [1, 1]} : vector<1x128xf32> to vector<1x20xf32>
    %23 = arith.negf %22 : vector<1x20xf32>
    %24 = math.exp %23 : vector<1x20xf32>
    %cst_14 = arith.constant 1.000000e+00 : f32
    %25 = vector.broadcast %cst_14 : f32 to vector<1x20xf32>
    %26 = arith.addf %25, %24 : vector<1x20xf32>
    %27 = arith.divf %25, %26 : vector<1x20xf32>
    %28 = vector.extract_strided_slice %9 {offsets = [0, 96], sizes = [1, 20], strides = [1, 1]} : vector<1x128xf32> to vector<1x20xf32>
    %29 = math.tanh %28 : vector<1x20xf32>
    %30 = arith.mulf %21, %2 : vector<1x20xf32>
    %31 = arith.mulf %15, %29 : vector<1x20xf32>
    %32 = arith.addf %30, %31 : vector<1x20xf32>
    %33 = math.tanh %32 : vector<1x20xf32>
    %34 = arith.mulf %27, %33 : vector<1x20xf32>
    %c0_15 = arith.constant 0 : index
    %c0_16 = arith.constant 0 : index
    %35 = vector.load %arg6[%c0_15, %c0_16] : memref<20x5xf32, #tpu.memory_space<vmem>>, vector<20x5xf32>
    %cst_17 = arith.constant dense<0.000000e+00> : vector<1x5xf32>
    %36 = tpu.matmul %34, %35, %cst_17 {dimension_numbers = #tpu.dot_dimension_numbers<[1], [0], [0], [1], [0, 0, 1, 1], [], []>} : vector<1x20xf32>, vector<20x5xf32>, vector<1x5xf32> -> vector<1x5xf32>
    %c0_18 = arith.constant 0 : index
    %c0_19 = arith.constant 0 : index
    %37 = vector.load %arg7[%c0_18, %c0_19] : memref<1x5xf32, #tpu.memory_space<vmem>>, vector<1x5xf32>
    %38 = arith.addf %36, %37 : vector<1x5xf32>
    %c0_20 = arith.constant 0 : index
    %c0_21 = arith.constant 0 : index
    %39 = vector.load %arg8[%c0_20, %c0_21] : memref<1x5xf32, #tpu.memory_space<vmem>>, vector<1x5xf32>
    tpu.vector_store %arg8[%c0_20, %c0_21], %38 {strides = array<i32>} : memref<1x5xf32, #tpu.memory_space<vmem>>, vector<1x5xf32>,
    %c0_22 = arith.constant 0 : index
    %c0_23 = arith.constant 0 : index
    %40 = vector.load %arg9[%c0_22, %c0_23] : memref<1x20xf32, #tpu.memory_space<vmem>>, vector<1x20xf32>
    tpu.vector_store %arg9[%c0_22, %c0_23], %34 {strides = array<i32>} : memref<1x20xf32, #tpu.memory_space<vmem>>, vector<1x20xf32>,
    %c0_24 = arith.constant 0 : index
    %c0_25 = arith.constant 0 : index
    %41 = vector.load %arg10[%c0_24, %c0_25] : memref<1x20xf32, #tpu.memory_space<vmem>>, vector<1x20xf32>
    tpu.vector_store %arg10[%c0_24, %c0_25], %32 {strides = array<i32>} : memref<1x20xf32, #tpu.memory_space<vmem>>, vector<1x20xf32>,
    return
  }
}

</mosaic_0001>

<llo_original>
// kernel: tpu_custom_call.1
$region0: #{tpu_custom_call.1}
  #allocation0 [shape = 'u32[]', space=smem, size = 0x4, offset = 0x4, fixed_abs, tag = 'smem constant byte address 0x4 - core index']
  #allocation1 [shape = 'u32[144,128]{1,0:T(1,128)}', space=vmem, size = 0x12000, scoped, tag = 'internal scratch']
  %s0 = inlined_call_operand.vmem [shape: f32[1,10], index: 0, kind: input, shape index: {}]
  %s1 = inlined_call_operand.vmem [shape: f32[1,20], index: 1, kind: input, shape index: {}]
  %s2 = inlined_call_operand.vmem [shape: f32[1,20], index: 2, kind: input, shape index: {}]
  %s3 = inlined_call_operand.hbm [shape: f32[10,128], index: 3, kind: input, shape index: {}]
  %s4 = inlined_call_operand.vmem [shape: f32[20,128], index: 4, kind: input, shape index: {}]
  %s5 = inlined_call_operand.vmem [shape: f32[1,128], index: 5, kind: input, shape index: {}]
  %s6 = inlined_call_operand.vmem [shape: f32[20,5], index: 6, kind: input, shape index: {}]
  %s7 = inlined_call_operand.vmem [shape: f32[1,5], index: 7, kind: input, shape index: {}]
  %s8 = inlined_call_operand.hbm [shape: f32[1,5], index: 8, kind: output, shape index: {0}]
  %s9 = inlined_call_operand.hbm [shape: f32[1,20], index: 9, kind: output, shape index: {1}]
  %s10 = inlined_call_operand.hbm [shape: f32[1,20], index: 10, kind: output, shape index: {2}]
  %11 = xla_tuple %s8, %s9, %s10
  %s12 = sld [smem:[#allocation0]]
  $region62: #{tpu_custom_call.1} parent=0
    _
  %s14 = ssub.s32 1, %s12
  %s15 = scalar_select 0, %s14, %s12
  $region1: #{tpu_custom_call.1} parent=0
    #allocation2 [shape = 'u8[8192]{0}', space=vmem, size = 0x2000, scoped, tag = 'input window, operand 3, single buffered']
    #allocation3 [shape = 's32[1]{0}', space=sflag, size = 0x4, scoped, tag = 'scoped memory for tpu_custom_call.1']
    #allocation4 [shape = 's32[1]{0}', space=sflag, size = 0x4, scoped, tag = 'scoped memory for tpu_custom_call.1']
    #allocation5 [shape = 'u8[512]{0}', space=vmem, size = 0x400, scoped, tag = 'output window, operand 0, single buffered']
    #allocation6 [shape = 'u8[512]{0}', space=vmem, size = 0x400, scoped, tag = 'output window, operand 1, single buffered']
    #allocation7 [shape = 's32[1]{0}', space=sflag, size = 0x4, scoped, tag = 'scoped memory for tpu_custom_call.1']
    #allocation8 [shape = 'u8[512]{0}', space=vmem, size = 0x400, scoped, tag = 'output window, operand 2, single buffered']
    %16 = vsyncpa [#allocation3], 0
    %17 = vsyncpa [#allocation4], 0
    %18 = vsyncpa [#allocation7], 0
    // Predicated region
    $region2: #{tpu_custom_call.1} parent=1 // pred_check
      _
    $region3: #{tpu_custom_call.1} parent=1 // pred_check_branch
      %20 = sbr.rel (0) target = $region5
    $region4: #{tpu_custom_call.1} parent=1 // pred_region
      _
    $region5: #{tpu_custom_call.1} parent=1 // pred_fallthru
      _
    // Predicated region
    $region6: #{tpu_custom_call.1} parent=1 // pred_check
      _
    $region7: #{tpu_custom_call.1} parent=1 // pred_check_branch
      %22 = sbr.rel (0) target = $region9
    $region8: #{tpu_custom_call.1} parent=1 // pred_region
      _
    $region9: #{tpu_custom_call.1} parent=1 // pred_fallthru
      _
    // Predicated region
    $region10: #{tpu_custom_call.1} parent=1 // pred_check
      _
    $region11: #{tpu_custom_call.1} parent=1 // pred_check_branch
      %24 = sbr.rel (0) target = $region13
    $region12: #{tpu_custom_call.1} parent=1 // pred_region
      _
    $region13: #{tpu_custom_call.1} parent=1 // pred_fallthru
      _
    // Predicated region
    $region14: #{tpu_custom_call.1} parent=1 // pred_check
      _
    $region15: #{tpu_custom_call.1} parent=1 // pred_check_branch
      %26 = sbr.rel (0) target = $region17
    $region16: #{tpu_custom_call.1} parent=1 // pred_region
      %s28 = ssub.s32 256, 256
      %29 = vsyncadd [#allocation3], %s28
      %s30 = sshll.u32 [#allocation2], 4
      %s31 = int_to_ptr.vmem [resolvable:$true] %s30
      %36 = dma.hbm_to_vmem [thread:$0]  %s3, 256, %s31, [#allocation3], 128, 128, 8
    $region17: #{tpu_custom_call.1} parent=1 // pred_fallthru
      _
    // Predicated region
    $region18: #{tpu_custom_call.1} parent=1 // pred_check
      _
    $region19: #{tpu_custom_call.1} parent=1 // pred_check_branch
      %38 = sbr.rel (0) target = $region21
    $region20: #{tpu_custom_call.1} parent=1 // pred_region
      _
    $region21: #{tpu_custom_call.1} parent=1 // pred_fallthru
      _
    // Predicated region
    $region22: #{tpu_custom_call.1} parent=1 // pred_check
      _
    $region23: #{tpu_custom_call.1} parent=1 // pred_check_branch
      %40 = sbr.rel (0) target = $region25
    $region24: #{tpu_custom_call.1} parent=1 // pred_region
      _
    $region25: #{tpu_custom_call.1} parent=1 // pred_fallthru
      _
    // Predicated region
    $region26: #{tpu_custom_call.1} parent=1 // pred_check
      _
    $region27: #{tpu_custom_call.1} parent=1 // pred_check_branch
      %42 = sbr.rel (0) target = $region29
    $region28: #{tpu_custom_call.1} parent=1 // pred_region
      _
    $region29: #{tpu_custom_call.1} parent=1 // pred_fallthru
      _
    // Predicated region
    $region30: #{tpu_custom_call.1} parent=1 // pred_check
      _
    $region31: #{tpu_custom_call.1} parent=1 // pred_check_branch
      %44 = sbr.rel (0) target = $region33
    $region32: #{tpu_custom_call.1} parent=1 // pred_region
      _
    $region33: #{tpu_custom_call.1} parent=1 // pred_fallthru
      _
    // Predicated region
    $region34: #{tpu_custom_call.1} parent=1 // pred_check
      _
    $region35: #{tpu_custom_call.1} parent=1 // pred_check_branch
      %46 = sbr.rel (0) target = $region37
    $region36: #{tpu_custom_call.1} parent=1 // pred_region
      %47 = dma.done [#allocation3], 256
    $region37: #{tpu_custom_call.1} parent=1 // pred_fallthru
      _
    %v48 = vld [vmem:[%s0] sm:$0x1]
    %v49 = vld [vmem:[%s1] sm:$0x1]
    %v50 = vld [vmem:[%s2] sm:$0x1]
    %v51 = vld [vmem:[#allocation2] sm:$0xff]
    %v52 = vld [vmem:[#allocation2 + $0x8] sm:$0x3]
    %v53 = vld [vmem:[%s4] sm:$0xff]
    %v54 = vld [vmem:[%s4 + $0x8] sm:$0xff]
    %v55 = vld [vmem:[%s4 + $0x10] sm:$0xf]
    %vm56 = vcmask 162816
    %v58 = vsel %vm56, %v49, 0
    %vm60 = vcmask 1043456
    %v62 = vsel %vm60, %v55, 0
    %64 = vmatprep.subr.mxu0 0.0
    %65 = vmatpush1.msra.mxu0 0.0
    %66 = vmatprep.subr.mxu0 0.0
    %67 = vmatpush1.msra.mxu0 0.0
    %68 = vmatprep.subr.mxu0 0.0
    %69 = vmatpush1.msra.mxu0 0.0
    %70 = vmatprep.subr.mxu0 0.0
    %71 = vmatpush1.msra.mxu0 0.0
    %72 = vmatprep.subr.mxu0 0.0
    %73 = vmatpush1.msra.mxu0 0.0
    %74 = vmatprep.subr.mxu0 0.0
    %75 = vmatpush1.msra.mxu0 0.0
    %76 = vmatprep.subr.mxu0 0.0
    %77 = vmatpush1.msra.mxu0 0.0
    %78 = vmatprep.subr.mxu0 0.0
    %79 = vmatpush1.msra.mxu0 0.0
    %80 = vmatprep.subr.mxu0 0.0
    %81 = vmatpush1.msra.mxu0 0.0
    %82 = vmatprep.subr.mxu0 0.0
    %83 = vmatpush1.msra.mxu0 0.0
    %84 = vmatprep.subr.mxu0 0.0
    %85 = vmatpush1.msra.mxu0 0.0
    %86 = vmatprep.subr.mxu0 0.0
    %87 = vmatpush1.msra.mxu0 0.0
    %88 = vmatprep.subr.mxu0 0.0
    %89 = vmatpush1.msra.mxu0 0.0
    %90 = vmatprep.subr.mxu0 0.0
    %91 = vmatpush1.msra.mxu0 %v62
    %92 = vmatprep.subr.mxu0 0.0
    %93 = vmatpush1.msra.mxu0 %v54
    %94 = vmatprep.subr.mxu0 0.0
    %95 = vmatpush1.msra.mxu0 %v53
    %96 = vmatprep.subr.mxu0 0.0
    %97 = vmatpush2.msra.mxu0 0.0
    %98 = vmatprep.subr.mxu0 0.0
    %99 = vmatpush2.msra.mxu0 0.0
    %100 = vmatprep.subr.mxu0 0.0
    %101 = vmatpush2.msra.mxu0 0.0
    %102 = vmatprep.subr.mxu0 0.0
    %103 = vmatpush2.msra.mxu0 0.0
    %104 = vmatprep.subr.mxu0 0.0
    %105 = vmatpush2.msra.mxu0 0.0
    %106 = vmatprep.subr.mxu0 0.0
    %107 = vmatpush2.msra.mxu0 0.0
    %108 = vmatprep.subr.mxu0 0.0
    %109 = vmatpush2.msra.mxu0 0.0
    %110 = vmatprep.subr.mxu0 0.0
    %111 = vmatpush2.msra.mxu0 0.0
    %112 = vmatprep.subr.mxu0 0.0
    %113 = vmatpush2.msra.mxu0 0.0
    %114 = vmatprep.subr.mxu0 0.0
    %115 = vmatpush2.msra.mxu0 0.0
    %116 = vmatprep.subr.mxu0 0.0
    %117 = vmatpush2.msra.mxu0 0.0
    %118 = vmatprep.subr.mxu0 0.0
    %119 = vmatpush2.msra.mxu0 0.0
    %120 = vmatprep.subr.mxu0 0.0
    %121 = vmatpush2.msra.mxu0 0.0
    %122 = vmatprep.subr.mxu0 0.0
    %123 = vmatpush2.msra.mxu0 0.0
    %124 = vmatprep.subr.mxu0 0.0
    %125 = vmatpush2.msra.mxu0 0.0
    %126 = vmatprep.subr.mxu0 0.0
    %127 = vmatpush2.msra.mxu0 0.0
    %128 = vmatprep.mubr.f32.mxu0 0.0
    %129 = vmatmul.mubr.f32.gmra.mxu0 %v58
    %v130 = vpop.f32.mrf.mxu0
    %v131 = vadd.f32 0.0, %v130
    %v132 = vpop.f32.mrf.mxu0
    %133 = vdwg.mxu0
    %vm134 = vcmask 80896
    %v136 = vsel %vm134, %v48, 0
    %vm138 = vcmask 1041408
    %v140 = vsel %vm138, %v52, 0
    %142 = vmatprep.subr.mxu0 0.0
    %143 = vmatpush1.msra.mxu0 0.0
    %144 = vmatprep.subr.mxu0 0.0
    %145 = vmatpush1.msra.mxu0 0.0
    %146 = vmatprep.subr.mxu0 0.0
    %147 = vmatpush1.msra.mxu0 0.0
    %148 = vmatprep.subr.mxu0 0.0
    %149 = vmatpush1.msra.mxu0 0.0
    %150 = vmatprep.subr.mxu0 0.0
    %151 = vmatpush1.msra.mxu0 0.0
    %152 = vmatprep.subr.mxu0 0.0
    %153 = vmatpush1.msra.mxu0 0.0
    %154 = vmatprep.subr.mxu0 0.0
    %155 = vmatpush1.msra.mxu0 0.0
    %156 = vmatprep.subr.mxu0 0.0
    %157 = vmatpush1.msra.mxu0 0.0
    %158 = vmatprep.subr.mxu0 0.0
    %159 = vmatpush1.msra.mxu0 0.0
    %160 = vmatprep.subr.mxu0 0.0
    %161 = vmatpush1.msra.mxu0 0.0
    %162 = vmatprep.subr.mxu0 0.0
    %163 = vmatpush1.msra.mxu0 0.0
    %164 = vmatprep.subr.mxu0 0.0
    %165 = vmatpush1.msra.mxu0 0.0
    %166 = vmatprep.subr.mxu0 0.0
    %167 = vmatpush1.msra.mxu0 0.0
    %168 = vmatprep.subr.mxu0 0.0
    %169 = vmatpush1.msra.mxu0 0.0
    %170 = vmatprep.subr.mxu0 0.0
    %171 = vmatpush1.msra.mxu0 %v140
    %172 = vmatprep.subr.mxu0 0.0
    %173 = vmatpush1.msra.mxu0 %v51
    %174 = vmatprep.subr.mxu0 0.0
    %175 = vmatpush2.msra.mxu0 0.0
    %176 = vmatprep.subr.mxu0 0.0
    %177 = vmatpush2.msra.mxu0 0.0
    %178 = vmatprep.subr.mxu0 0.0
    %179 = vmatpush2.msra.mxu0 0.0
    %180 = vmatprep.subr.mxu0 0.0
    %181 = vmatpush2.msra.mxu0 0.0
    %182 = vmatprep.subr.mxu0 0.0
    %183 = vmatpush2.msra.mxu0 0.0
    %184 = vmatprep.subr.mxu0 0.0
    %185 = vmatpush2.msra.mxu0 0.0
    %186 = vmatprep.subr.mxu0 0.0
    %187 = vmatpush2.msra.mxu0 0.0
    %188 = vmatprep.subr.mxu0 0.0
    %189 = vmatpush2.msra.mxu0 0.0
    %190 = vmatprep.subr.mxu0 0.0
    %191 = vmatpush2.msra.mxu0 0.0
    %192 = vmatprep.subr.mxu0 0.0
    %193 = vmatpush2.msra.mxu0 0.0
    %194 = vmatprep.subr.mxu0 0.0
    %195 = vmatpush2.msra.mxu0 0.0
    %196 = vmatprep.subr.mxu0 0.0
    %197 = vmatpush2.msra.mxu0 0.0
    %198 = vmatprep.subr.mxu0 0.0
    %199 = vmatpush2.msra.mxu0 0.0
    %200 = vmatprep.subr.mxu0 0.0
    %201 = vmatpush2.msra.mxu0 0.0
    %202 = vmatprep.subr.mxu0 0.0
    %203 = vmatpush2.msra.mxu0 0.0
    %204 = vmatprep.subr.mxu0 0.0
    %205 = vmatpush2.msra.mxu0 0.0
    %206 = vmatprep.mubr.f32.mxu0 0.0
    %207 = vmatmul.mubr.f32.gmra.mxu0 %v136
    %v208 = vpop.f32.mrf.mxu0
    %v209 = vadd.f32 %v131, %v208
    %v210 = vpop.f32.mrf.mxu0
    %211 = vdwg.mxu0
    %v212 = vld [vmem:[%s5] sm:$0x1]
    %v213 = vadd.f32 %v209, %v212
    %v214 = vxor.u32 %v213, 2147483648
    %v215 = vmul.f32 %v214, 1.442695
    %v216 = vpow.pop %v215
    %v217 = vadd.f32 %v216, 1.0
    %v218 = vrcp.pop %v217
    %v219 = vmul.f32 1.0, %v218
    %v220 = vtanh.pop %v213
    %v222 = vlaneseq
    %v223 = vshrl.u32 %v222, 7
    %v224 = vsub.s32 0, %v223
    %v225 = vrot.slane %v50, %v224
    %226 = vrot.lane.b32.xlu0 %v225, 32
    %v227 = vpop.permute.xlu0 %226
    %v229 = vmul.f32 %v219, %v227
    %231 = vrot.lane.b32.xlu0 %v220, 32
    %v232 = vpop.permute.xlu0 %231
    %v234 = vmul.f32 %v219, %v232
    %236 = vrot.lane.b32.xlu0 %v234, 32
    %v237 = vpop.permute.xlu0 %236
    %v239 = vadd.f32 %v229, %v237
    %v240 = vtanh.pop %v239
    %242 = vrot.lane.b32.xlu0 %v240, 32
    %v243 = vpop.permute.xlu0 %242
    %v245 = vmul.f32 %v219, %v243
    %v246 = vld [vmem:[%s6] sm:$0xff]
    %v247 = vld [vmem:[%s6 + $0x8] sm:$0xff]
    %v248 = vld [vmem:[%s6 + $0x10] sm:$0xf]
    %v249 = vld [vmem:[%s7] sm:$0x1]
    %251 = vrot.lane.b32.xlu0 %v245, 64
    %v252 = vpop.permute.xlu0 %251
    %v253 = vsel %vm56, %v252, 0
    %v256 = vsel %vm60, %v248, 0
    %258 = vmatprep.subr.mxu0 0.0
    %259 = vmatpush1.msra.mxu0 0.0
    %260 = vmatprep.subr.mxu0 0.0
    %261 = vmatpush1.msra.mxu0 0.0
    %262 = vmatprep.subr.mxu0 0.0
    %263 = vmatpush1.msra.mxu0 0.0
    %264 = vmatprep.subr.mxu0 0.0
    %265 = vmatpush1.msra.mxu0 0.0
    %266 = vmatprep.subr.mxu0 0.0
    %267 = vmatpush1.msra.mxu0 0.0
    %268 = vmatprep.subr.mxu0 0.0
    %269 = vmatpush1.msra.mxu0 0.0
    %270 = vmatprep.subr.mxu0 0.0
    %271 = vmatpush1.msra.mxu0 0.0
    %272 = vmatprep.subr.mxu0 0.0
    %273 = vmatpush1.msra.mxu0 0.0
    %274 = vmatprep.subr.mxu0 0.0
    %275 = vmatpush1.msra.mxu0 0.0
    %276 = vmatprep.subr.mxu0 0.0
    %277 = vmatpush1.msra.mxu0 0.0
    %278 = vmatprep.subr.mxu0 0.0
    %279 = vmatpush1.msra.mxu0 0.0
    %280 = vmatprep.subr.mxu0 0.0
    %281 = vmatpush1.msra.mxu0 0.0
    %282 = vmatprep.subr.mxu0 0.0
    %283 = vmatpush1.msra.mxu0 0.0
    %284 = vmatprep.subr.mxu0 0.0
    %285 = vmatpush1.msra.mxu0 %v256
    %286 = vmatprep.subr.mxu0 0.0
    %287 = vmatpush1.msra.mxu0 %v247
    %288 = vmatprep.subr.mxu0 0.0
    %289 = vmatpush1.msra.mxu0 %v246
    %290 = vmatprep.subr.mxu0 0.0
    %291 = vmatpush2.msra.mxu0 0.0
    %292 = vmatprep.subr.mxu0 0.0
    %293 = vmatpush2.msra.mxu0 0.0
    %294 = vmatprep.subr.mxu0 0.0
    %295 = vmatpush2.msra.mxu0 0.0
    %296 = vmatprep.subr.mxu0 0.0
    %297 = vmatpush2.msra.mxu0 0.0
    %298 = vmatprep.subr.mxu0 0.0
    %299 = vmatpush2.msra.mxu0 0.0
    %300 = vmatprep.subr.mxu0 0.0
    %301 = vmatpush2.msra.mxu0 0.0
    %302 = vmatprep.subr.mxu0 0.0
    %303 = vmatpush2.msra.mxu0 0.0
    %304 = vmatprep.subr.mxu0 0.0
    %305 = vmatpush2.msra.mxu0 0.0
    %306 = vmatprep.subr.mxu0 0.0
    %307 = vmatpush2.msra.mxu0 0.0
    %308 = vmatprep.subr.mxu0 0.0
    %309 = vmatpush2.msra.mxu0 0.0
    %310 = vmatprep.subr.mxu0 0.0
    %311 = vmatpush2.msra.mxu0 0.0
    %312 = vmatprep.subr.mxu0 0.0
    %313 = vmatpush2.msra.mxu0 0.0
    %314 = vmatprep.subr.mxu0 0.0
    %315 = vmatpush2.msra.mxu0 0.0
    %316 = vmatprep.subr.mxu0 0.0
    %317 = vmatpush2.msra.mxu0 0.0
    %318 = vmatprep.subr.mxu0 0.0
    %319 = vmatpush2.msra.mxu0 0.0
    %320 = vmatprep.subr.mxu0 0.0
    %321 = vmatpush2.msra.mxu0 0.0
    %322 = vmatprep.mubr.f32.mxu0 0.0
    %323 = vmatmul.mubr.f32.gmra.mxu0 %v253
    %v324 = vpop.f32.mrf.mxu0
    %v325 = vadd.f32 %v249, %v324
    %v326 = vpop.f32.mrf.mxu0
    %327 = vdwg.mxu0
    %vm328 = vcmask 32768
    %329 = vst.msk [vmem:[#allocation5] sm:$0x1] %vm328, %v325
    %vm331 = vcmask 155648
    %332 = vst.msk [vmem:[#allocation6] sm:$0x1] %vm331, %v252
    %334 = vrot.lane.b32.xlu0 %v239, 96
    %v335 = vpop.permute.xlu0 %334
    %337 = vst.msk [vmem:[#allocation8] sm:$0x1] %vm331, %v335
    // Predicated region
    $region38: #{tpu_custom_call.1} parent=1 // pred_check
      _
    $region39: #{tpu_custom_call.1} parent=1 // pred_check_branch
      %339 = sbr.rel (0) target = $region41
    $region40: #{tpu_custom_call.1} parent=1 // pred_region
      %s341 = ssub.s32 16, 16
      %342 = vsyncadd [#allocation4], %s341
      %s344 = sshll.u32 [#allocation5], 4
      %s345 = int_to_ptr.vmem [resolvable:$true] %s344
      %347 = dma.vmem_to_hbm [thread:$0]  %s345, 16, %s8, [#allocation4]
    $region41: #{tpu_custom_call.1} parent=1 // pred_fallthru
      _
    // Predicated region
    $region42: #{tpu_custom_call.1} parent=1 // pred_check
      _
    $region43: #{tpu_custom_call.1} parent=1 // pred_check_branch
      %349 = sbr.rel (0) target = $region45
    $region44: #{tpu_custom_call.1} parent=1 // pred_region
      %s351 = ssub.s32 16, 16
      %352 = vsyncadd [#allocation7], %s351
      %s354 = sshll.u32 [#allocation6], 4
      %s355 = int_to_ptr.vmem [resolvable:$true] %s354
      %357 = dma.vmem_to_hbm [thread:$0]  %s355, 16, %s9, [#allocation7]
    $region45: #{tpu_custom_call.1} parent=1 // pred_fallthru
      _
    // Predicated region
    $region46: #{tpu_custom_call.1} parent=1 // pred_check
      _
    $region47: #{tpu_custom_call.1} parent=1 // pred_check_branch
      %359 = sbr.rel (0) target = $region49
    $region48: #{tpu_custom_call.1} parent=1 // pred_region
      %s361 = ssub.s32 16, 16
      %362 = vsyncadd [#allocation7], %s361
      %s364 = sshll.u32 [#allocation8], 4
      %s365 = int_to_ptr.vmem [resolvable:$true] %s364
      %367 = dma.vmem_to_hbm [thread:$0]  %s365, 16, %s10, [#allocation7]
    $region49: #{tpu_custom_call.1} parent=1 // pred_fallthru
      _
    // Predicated region
    $region50: #{tpu_custom_call.1} parent=1 // pred_check
      _
    $region51: #{tpu_custom_call.1} parent=1 // pred_check_branch
      %369 = sbr.rel (0) target = $region53
    $region52: #{tpu_custom_call.1} parent=1 // pred_region
      %370 = dma.done [#allocation4], 16
    $region53: #{tpu_custom_call.1} parent=1 // pred_fallthru
      _
    // Predicated region
    $region54: #{tpu_custom_call.1} parent=1 // pred_check
      _
    $region55: #{tpu_custom_call.1} parent=1 // pred_check_branch
      %372 = sbr.rel (0) target = $region57
    $region56: #{tpu_custom_call.1} parent=1 // pred_region
      %373 = dma.done [#allocation7], 16
    $region57: #{tpu_custom_call.1} parent=1 // pred_fallthru
      _
    // Predicated region
    $region58: #{tpu_custom_call.1} parent=1 // pred_check
      _
    $region59: #{tpu_custom_call.1} parent=1 // pred_check_branch
      %375 = sbr.rel (0) target = $region61
    $region60: #{tpu_custom_call.1} parent=1 // pred_region
      %376 = dma.done [#allocation7], 16
    $region61: #{tpu_custom_call.1} parent=1 // pred_fallthru
      _
    %377 = vsyncpa [#allocation3], 1
    %378 = vsyncpa [#allocation4], 1
    %379 = vsyncpa [#allocation7], 1

</llo_original>
